<compile_context>
chip_gen: v5e
topology: v5e:2x2
jax: 0.10.0
libtpu: 0.0.40
codegen_flags: <defaults>
</compile_context>

<pallas_src>
import functools

import jax
import jax.numpy as jnp
from jax.experimental import pallas as pl
from jax.experimental.pallas import tpu as pltpu


def _round_up(a, m):
    return (a + m - 1) // m * m


def temporal_block_kernel(x_ref, w1_ref, w2_ref, b_ref, m_ref, o_ref, *, K, dilation):
    f32 = jnp.float32
    cp_out = o_ref.shape[0]

    x = x_ref[...]                       # (Cp_in, G), compute dtype (bf16 or f32)
    mask = m_ref[...]                    # (1, G) f32: 1.0 on data lanes, 0.0 on pad/tail
    bias = b_ref[...].astype(f32)        # (3*Cp_out, 1): [b1 | bd | b2]

    def taps(z):
        # K dilated causal taps stacked along sublanes; tap j pairs with weight
        # columns [j*C : (j+1)*C].  pltpu.roll keeps the lane shifts on the XLU
        # (no zero-fill copies).  Wraparound lanes land only in per-segment pad
        # lanes or the tail round-up lanes: those are zero in x, forced to zero
        # in h1 by `mask`, and never read by a data lane of the output.
        cols = []
        for j in range(K):
            s = (K - 1 - j) * dilation
            cols.append(z if s == 0 else pltpu.roll(z, s, 1))
        return cols[0] if K == 1 else jnp.concatenate(cols, axis=0)

    # ---- conv1 + residual 1x1 in one MXU pass (residual rides as extra rows) ----
    y1 = jnp.dot(w1_ref[...], taps(x), preferred_element_type=f32)    # (2*Cp_out, G)
    h1 = mask * jnp.maximum(y1[:cp_out] + bias[:cp_out], 0.0)         # chomp->ReLU (dropout=id)
    res = y1[cp_out:] + bias[cp_out:2 * cp_out]                       # wd @ x + bd

    # ---- conv2 + bias: one MXU pass ----
    h1c = h1.astype(x.dtype)
    y2 = jnp.dot(w2_ref[...], taps(h1c), preferred_element_type=f32)  # (Cp_out, G)
    h2 = jnp.maximum(y2 + bias[2 * cp_out:], 0.0)                     # ReLU (dropout = id)

    o_ref[...] = jnp.maximum(h2 + res, 0.0).astype(o_ref.dtype)


def temporal_block(x, w1, b1, w2, b2, wd=None, bd=None, *, kernel_size, dilation,
                   lane_tile=2048, compute_dtype=jnp.bfloat16):
    """x: (B, C_in, L) f32.  Weights pre-resolved (weight_norm already applied).
    wd=None / bd=None means downsample=None (identity residual, requires C_in==C_out)."""
    B, C_in, L = x.shape
    C_out = w1.shape[0]
    K = kernel_size
    d = dilation
    pad = (K - 1) * d                     # == Chomp1d.chomp_size
    seg = L + pad                         # per-batch lane segment: [pad zeros | L samples]

    if wd is None:                        # PyTorch: downsample=None when n_inputs==n_outputs
        assert C_in == C_out, "identity residual requires C_in == C_out"
        wd = jnp.eye(C_out, dtype=jnp.float32)
    if bd is None:
        bd = jnp.zeros((C_out,), jnp.float32)

    Cp_in = _round_up(C_in, 8)
    Cp_out = _round_up(C_out, 8)

    # Segments folded into one grid step; cap at ceil(B/2) so the parallel grid axis
    # has >= 2 steps (v7x has two TensorCores).  G is a multiple of 128 (lane-dense
    # unmasked stores).
    seg_per_step = min(B, max(1, lane_tile // seg))
    if B >= 2:
        seg_per_step = min(seg_per_step, (B + 1) // 2)
    num_steps = (B + seg_per_step - 1) // seg_per_step
    B_r = num_steps * seg_per_step
    G = _round_up(seg_per_step * seg, 128)

    # ---- lane-concatenated, causally left-padded input: (Cp_in, num_steps*G) ----
    xp = jnp.pad(x, ((0, B_r - B), (0, Cp_in - C_in), (pad, 0)))        # (B_r, Cp_in, seg)
    xg = xp.reshape(num_steps, seg_per_step, Cp_in, seg)
    xg = jnp.transpose(xg, (0, 2, 1, 3)).reshape(num_steps, Cp_in, seg_per_step * seg)
    xg = jnp.pad(xg, ((0, 0), (0, 0), (0, G - seg_per_step * seg)))     # (S, Cp_in, G)
    x_cat = jnp.transpose(xg, (1, 0, 2)).reshape(Cp_in, num_steps * G).astype(compute_dtype)

    KIN = K * Cp_in                       # conv1 contraction (no bias rows anymore)
    KOUT = K * Cp_out                     # conv2 contraction

    # ---- fused conv1 weight: conv1 taps + residual 1x1 on the zero-shift tap ----
    w1_t = jnp.pad(jnp.transpose(w1, (0, 2, 1)),
                   ((0, Cp_out - C_out), (0, 0), (0, Cp_in - C_in)))    # (Cp_out, K, Cp_in)
    wd_p = jnp.pad(wd, ((0, Cp_out - C_out), (0, Cp_in - C_in)))
    W1aug = jnp.zeros((2 * Cp_out, KIN), jnp.float32)
    W1aug = W1aug.at[:Cp_out, :].set(w1_t.reshape(Cp_out, KIN))
    W1aug = W1aug.at[Cp_out:, (K - 1) * Cp_in:].set(wd_p)               # residual = tap K-1
    W1aug = W1aug.astype(compute_dtype)

    # ---- conv2 weight ----
    w2_t = jnp.pad(jnp.transpose(w2, (0, 2, 1)),
                   ((0, Cp_out - C_out), (0, 0), (0, Cp_out - C_out)))  # (Cp_out, K, Cp_out)
    W2aug = w2_t.reshape(Cp_out, KOUT).astype(compute_dtype)

    # ---- packed biases (kept f32; applied as broadcast adds after each dot) ----
    b1_p = jnp.pad(b1, (0, Cp_out - C_out))
    bd_p = jnp.pad(bd, (0, Cp_out - C_out))
    b2_p = jnp.pad(b2, (0, Cp_out - C_out))
    bias = jnp.concatenate([b1_p, bd_p, b2_p]).reshape(3 * Cp_out, 1).astype(jnp.float32)

    # ---- static lane mask, computed once (not per grid step) ----
    lane = jnp.arange(G, dtype=jnp.int32)
    data = jnp.logical_and(lane % seg >= pad, lane < seg_per_step * seg)
    mask = jnp.where(data, 1.0, 0.0).astype(jnp.float32).reshape(1, G)

    # ---- explicit per-step VMEM budget (headroom, clamped for v7x's 64 MiB VMEM) ----
    isz = jnp.dtype(compute_dtype).itemsize
    per_step = (2 * Cp_in * G * isz                      # double-buffered input tile
                + 2 * Cp_out * G * 4                     # double-buffered output tile
                + 2 * (2 * Cp_out * KIN + Cp_out * KOUT) * isz
                + 2 * (3 * Cp_out + G) * 4               # bias + mask
                + (KIN + KOUT) * G * isz                 # im2col operands
                + 4 * Cp_out * G * 4)                    # y1/h1/y2/res transients
    vmem_limit = int(min(32 * 1024 * 1024, max(4 * per_step, 8 * 1024 * 1024)))

    kern = functools.partial(temporal_block_kernel, K=K, dilation=d)

    out_cat = pl.pallas_call(
        kern,
        out_shape=jax.ShapeDtypeStruct((Cp_out, num_steps * G), jnp.float32),
        grid_spec=pltpu.PrefetchScalarGridSpec(
            num_scalar_prefetch=0,
            grid=(num_steps,),
            in_specs=[
                pl.BlockSpec((Cp_in, G), lambda g: (0, g)),             # x (lane group)
                pl.BlockSpec((2 * Cp_out, KIN), lambda g: (0, 0)),      # fused conv1 + residual
                pl.BlockSpec((Cp_out, KOUT), lambda g: (0, 0)),         # conv2
                pl.BlockSpec((3 * Cp_out, 1), lambda g: (0, 0)),        # packed biases
                pl.BlockSpec((1, G), lambda g: (0, 0)),                 # static lane mask
            ],
            out_specs=pl.BlockSpec((Cp_out, G), lambda g: (0, g)),
        ),
        compiler_params=pltpu.CompilerParams(
            dimension_semantics=("parallel",),
            vmem_limit_bytes=vmem_limit),
    )(x_cat, W1aug, W2aug, bias, mask)

    # ---- unfold lanes back to (B, C_out, L); drop pad slots, tail lanes, channel pad ----
    o = out_cat.reshape(Cp_out, num_steps, G)[:, :, :seg_per_step * seg]
    o = o.reshape(Cp_out, num_steps, seg_per_step, seg)
    o = jnp.transpose(o, (1, 2, 0, 3)).reshape(B_r, Cp_out, seg)
    return o[:B, :C_out, pad:]


def weight_norm_effective(v, g):
    # PyTorch weight_norm(dim=0): w = g * v / ||v||, norm over all dims except 0.
    norm = jnp.sqrt(jnp.sum(v * v, axis=tuple(range(1, v.ndim)), keepdims=True))
    return g * v / norm


def ref_forward(x, w1, b1, w2, b2, wd, bd, kernel_size, dilation):
    pad = (kernel_size - 1) * dilation

    def causal_conv(h, w, b):
        hp = jnp.pad(h, ((0, 0), (0, 0), (pad, 0)))
        L = h.shape[-1]
        out = sum(
            jnp.einsum('oi,bil->bol', w[:, :, j],
                       hp[:, :, j * dilation: j * dilation + L])
            for j in range(kernel_size))
        return out + b[None, :, None]

    h1 = jax.nn.relu(causal_conv(x, w1, b1))
    h2 = jax.nn.relu(causal_conv(h1, w2, b2))
    if wd is None:
        res = x
    else:
        res = jnp.einsum('oi,bil->bol', wd, x) + bd[None, :, None]
    return jax.nn.relu(h2 + res)


if __name__ == "__main__":
    # --- Config 1: n_inputs != n_outputs (downsample 1x1 conv on the residual) ---
    n_inputs, n_outputs = 4, 8
    kernel_size, dilation = 3, 2
    padding = (kernel_size - 1) * dilation            # 4 (the Chomp1d chomp_size)
    B, L = 2, 16

    key = jax.random.PRNGKey(0)
    ks = jax.random.split(key, 8)

    x = jax.random.normal(ks[0], (B, n_inputs, L), jnp.float32)
    v1 = 0.01 * jax.random.normal(ks[1], (n_outputs, n_inputs, kernel_size), jnp.float32)
    g1 = 1.0 + 0.1 * jax.random.normal(ks[2], (n_outputs, 1, 1), jnp.float32)
    b1 = 0.1 * jax.random.normal(ks[3], (n_outputs,), jnp.float32)
    v2 = 0.01 * jax.random.normal(ks[4], (n_outputs, n_outputs, kernel_size), jnp.float32)
    g2 = 1.0 + 0.1 * jax.random.normal(ks[5], (n_outputs, 1, 1), jnp.float32)
    b2 = 0.1 * jax.random.normal(ks[6], (n_outputs,), jnp.float32)
    wd = 0.01 * jax.random.normal(ks[7], (n_outputs, n_inputs), jnp.float32)
    bd = jnp.zeros((n_outputs,), jnp.float32)

    w1 = weight_norm_effective(v1, g1)
    w2 = weight_norm_effective(v2, g2)
    ref = ref_forward(x, w1, b1, w2, b2, wd, bd, kernel_size, dilation)

    # f32 operands: tight structural check against the f32 reference.
    out_f32 = jax.block_until_ready(
        temporal_block(x, w1, b1, w2, b2, wd, bd, kernel_size=kernel_size,
                       dilation=dilation, compute_dtype=jnp.float32))
    assert out_f32.shape == (B, n_outputs, L)
    assert jnp.allclose(out_f32, ref, atol=1e-4, rtol=1e-4), "f32 path mismatch vs. reference"

    # bf16 operands with f32 accumulation: the performance configuration.  Tolerance is
    # loose only because of bf16 operand rounding; structure is asserted by the f32 run.
    out_bf16 = jax.block_until_ready(
        temporal_block(x, w1, b1, w2, b2, wd, bd, kernel_size=kernel_size,
                       dilation=dilation, compute_dtype=jnp.bfloat16))
    assert out_bf16.shape == (B, n_outputs, L)
    assert jnp.allclose(out_bf16, ref, atol=1e-1, rtol=1e-1), "bf16 path mismatch vs. reference"

    # --- Config 2: n_inputs == n_outputs (downsample=None -> identity residual),
    #     odd batch / length to exercise batch padding, channel padding and the
    #     multi-segment lane mask with rolled taps. ---
    n2, B2, L2, K2, d2 = 6, 5, 23, 2, 1
    k2 = jax.random.split(jax.random.PRNGKey(1), 7)
    x2 = jax.random.normal(k2[0], (B2, n2, L2), jnp.float32)
    v1b = 0.01 * jax.random.normal(k2[1], (n2, n2, K2), jnp.float32)
    g1b = 1.0 + 0.1 * jax.random.normal(k2[2], (n2, 1, 1), jnp.float32)
    b1b = 0.1 * jax.random.normal(k2[3], (n2,), jnp.float32)
    v2b = 0.01 * jax.random.normal(k2[4], (n2, n2, K2), jnp.float32)
    g2b = 1.0 + 0.1 * jax.random.normal(k2[5], (n2, 1, 1), jnp.float32)
    b2b = 0.1 * jax.random.normal(k2[6], (n2,), jnp.float32)
    w1b = weight_norm_effective(v1b, g1b)
    w2b = weight_norm_effective(v2b, g2b)
    ref2 = ref_forward(x2, w1b, b1b, w2b, b2b, None, None, K2, d2)
    out2 = jax.block_until_ready(
        temporal_block(x2, w1b, b1b, w2b, b2b, None, None, kernel_size=K2,
                       dilation=d2, compute_dtype=jnp.float32))
    assert out2.shape == (B2, n2, L2)
    assert jnp.allclose(out2, ref2, atol=1e-4, rtol=1e-4), "identity-residual path mismatch"

    print("KERNEL_OK")
</pallas_src>

<mosaic_0001>
module attributes {stable_mosaic.version = 11 : i64} {
  func.func @temporal_block_kernel(%arg0: i32, %arg1: memref<8x128xf32, #tpu.memory_space<vmem>>, %arg2: memref<16x24xf32, #tpu.memory_space<vmem>>, %arg3: memref<8x24xf32, #tpu.memory_space<vmem>>, %arg4: memref<24x1xf32, #tpu.memory_space<vmem>>, %arg5: memref<1x128xf32, #tpu.memory_space<vmem>>, %arg6: memref<8x128xf32, #tpu.memory_space<vmem>>) attributes {dimension_semantics = [#tpu.dimension_semantics<parallel>], iteration_bounds = array<i64: 2>, scalar_prefetch = 0 : i64, scratch_operands = 0 : i64, tpu.core_type = #tpu.core_type<tc>, window_params = [{transform_indices = @transform_0, window_bounds = array<i64: 8, 128>}, {pipeline_mode = #tpu.pipeline_mode<synchronous>, transform_indices = @transform_1, window_bounds = array<i64: 16, 24>}, {pipeline_mode = #tpu.pipeline_mode<synchronous>, transform_indices = @transform_2, window_bounds = array<i64: 8, 24>}, {pipeline_mode = #tpu.pipeline_mode<synchronous>, transform_indices = @transform_3, window_bounds = array<i64: 24, 1>}, {pipeline_mode = #tpu.pipeline_mode<synchronous>, transform_indices = @transform_4, window_bounds = array<i64: 1, 128>}, {transform_indices = @transform_5, window_bounds = array<i64: 8, 128>}]} {
    %c0 = arith.constant 0 : index
    %c0_0 = arith.constant 0 : index
    %0 = vector.load %arg1[%c0, %c0_0] : memref<8x128xf32, #tpu.memory_space<vmem>>, vector<8x128xf32>
    %c0_1 = arith.constant 0 : index
    %c0_2 = arith.constant 0 : index
    %1 = vector.load %arg5[%c0_1, %c0_2] : memref<1x128xf32, #tpu.memory_space<vmem>>, vector<1x128xf32>
    %c0_3 = arith.constant 0 : index
    %c0_4 = arith.constant 0 : index
    %2 = vector.load %arg4[%c0_3, %c0_4] : memref<24x1xf32, #tpu.memory_space<vmem>>, vector<24x1xf32>
    %c0_5 = arith.constant 0 : index
    %c0_6 = arith.constant 0 : index
    %3 = vector.load %arg2[%c0_5, %c0_6] : memref<16x24xf32, #tpu.memory_space<vmem>>, vector<16x24xf32>
    %c4_i32 = arith.constant 4 : i32
    %4 = tpu.dynamic_rotate %0 by %c4_i32 dim 1 : vector<8x128xf32>, i32 -> vector<8x128xf32>
    %c2_i32 = arith.constant 2 : i32
    %5 = tpu.dynamic_rotate %0 by %c2_i32 dim 1 : vector<8x128xf32>, i32 -> vector<8x128xf32>
    %6 = tpu.concatenate %4, %5, %0 in 0 : vector<8x128xf32>, vector<8x128xf32>, vector<8x128xf32> -> vector<24x128xf32>
    %cst = arith.constant dense<0.000000e+00> : vector<16x128xf32>
    %7 = tpu.matmul %3, %6, %cst {dimension_numbers = #tpu.dot_dimension_numbers<[1], [0], [0], [1], [0, 0, 1, 1], [], []>} : vector<16x24xf32>, vector<24x128xf32>, vector<16x128xf32> -> vector<16x128xf32>
    %8 = vector.extract_strided_slice %7 {offsets = [0, 0], sizes = [8, 128], strides = [1, 1]} : vector<16x128xf32> to vector<8x128xf32>
    %9 = vector.extract_strided_slice %2 {offsets = [0, 0], sizes = [8, 1], strides = [1, 1]} : vector<24x1xf32> to vector<8x1xf32>
    %10 = vector.broadcast %9 : vector<8x1xf32> to vector<8x128xf32>
    %11 = arith.addf %8, %10 : vector<8x128xf32>
    %cst_7 = arith.constant 0.000000e+00 : f32
    %12 = vector.broadcast %cst_7 : f32 to vector<8x128xf32>
    %13 = arith.maximumf %11, %12 : vector<8x128xf32>
    %14 = vector.broadcast %1 : vector<1x128xf32> to vector<8x128xf32>
    %15 = arith.mulf %14, %13 : vector<8x128xf32>
    %16 = vector.extract_strided_slice %7 {offsets = [8, 0], sizes = [8, 128], strides = [1, 1]} : vector<16x128xf32> to vector<8x128xf32>
    %17 = vector.extract_strided_slice %2 {offsets = [8, 0], sizes = [8, 1], strides = [1, 1]} : vector<24x1xf32> to vector<8x1xf32>
    %18 = vector.broadcast %17 : vector<8x1xf32> to vector<8x128xf32>
    %19 = arith.addf %16, %18 : vector<8x128xf32>
    %c0_8 = arith.constant 0 : index
    %c0_9 = arith.constant 0 : index
    %20 = vector.load %arg3[%c0_8, %c0_9] : memref<8x24xf32, #tpu.memory_space<vmem>>, vector<8x24xf32>
    %c4_i32_10 = arith.constant 4 : i32
    %21 = tpu.dynamic_rotate %15 by %c4_i32_10 dim 1 : vector<8x128xf32>, i32 -> vector<8x128xf32>
    %c2_i32_11 = arith.constant 2 : i32
    %22 = tpu.dynamic_rotate %15 by %c2_i32_11 dim 1 : vector<8x128xf32>, i32 -> vector<8x128xf32>
    %23 = tpu.concatenate %21, %22, %15 in 0 : vector<8x128xf32>, vector<8x128xf32>, vector<8x128xf32> -> vector<24x128xf32>
    %cst_12 = arith.constant dense<0.000000e+00> : vector<8x128xf32>
    %24 = tpu.matmul %20, %23, %cst_12 {dimension_numbers = #tpu.dot_dimension_numbers<[1], [0], [0], [1], [0, 0, 1, 1], [], []>} : vector<8x24xf32>, vector<24x128xf32>, vector<8x128xf32> -> vector<8x128xf32>
    %25 = vector.extract_strided_slice %2 {offsets = [16, 0], sizes = [8, 1], strides = [1, 1]} : vector<24x1xf32> to vector<8x1xf32>
    %26 = vector.broadcast %25 : vector<8x1xf32> to vector<8x128xf32>
    %27 = arith.addf %24, %26 : vector<8x128xf32>
    %cst_13 = arith.constant 0.000000e+00 : f32
    %28 = vector.broadcast %cst_13 : f32 to vector<8x128xf32>
    %29 = arith.maximumf %27, %28 : vector<8x128xf32>
    %30 = arith.addf %29, %19 : vector<8x128xf32>
    %cst_14 = arith.constant 0.000000e+00 : f32
    %31 = vector.broadcast %cst_14 : f32 to vector<8x128xf32>
    %32 = arith.maximumf %30, %31 : vector<8x128xf32>
    %c0_15 = arith.constant 0 : index
    %c0_16 = arith.constant 0 : index
    %33 = vector.load %arg6[%c0_15, %c0_16] : memref<8x128xf32, #tpu.memory_space<vmem>>, vector<8x128xf32>
    tpu.vector_store %arg6[%c0_15, %c0_16], %32 {strides = array<i32>} : memref<8x128xf32, #tpu.memory_space<vmem>>, vector<8x128xf32>,
    return
  }
  func.func @transform_0(%arg0: i32) -> (i32, i32) {
    %c0_i32 = arith.constant 0 : i32
    %c0_i32_0 = arith.constant 0 : i32
    return %c0_i32, %arg0 : i32, i32
  }
  func.func @transform_1(%arg0: i32) -> (i32, i32) {
    %c0_i32 = arith.constant 0 : i32
    %c0_i32_0 = arith.constant 0 : i32
    %c0_i32_1 = arith.constant 0 : i32
    return %c0_i32, %c0_i32_0 : i32, i32
  }
  func.func @transform_2(%arg0: i32) -> (i32, i32) {
    %c0_i32 = arith.constant 0 : i32
    %c0_i32_0 = arith.constant 0 : i32
    %c0_i32_1 = arith.constant 0 : i32
    return %c0_i32, %c0_i32_0 : i32, i32
  }
  func.func @transform_3(%arg0: i32) -> (i32, i32) {
    %c0_i32 = arith.constant 0 : i32
    %c0_i32_0 = arith.constant 0 : i32
    %c0_i32_1 = arith.constant 0 : i32
    return %c0_i32, %c0_i32_0 : i32, i32
  }
  func.func @transform_4(%arg0: i32) -> (i32, i32) {
    %c0_i32 = arith.constant 0 : i32
    %c0_i32_0 = arith.constant 0 : i32
    %c0_i32_1 = arith.constant 0 : i32
    return %c0_i32, %c0_i32_0 : i32, i32
  }
  func.func @transform_5(%arg0: i32) -> (i32, i32) {
    %c0_i32 = arith.constant 0 : i32
    %c0_i32_0 = arith.constant 0 : i32
    return %c0_i32, %arg0 : i32, i32
  }
}

</mosaic_0001>

<llo_original>
// kernel: tpu_custom_call.1
$region0: #{tpu_custom_call.1}
  #allocation0 [shape = 'u32[]', space=smem, size = 0x4, offset = 0x4, fixed_abs, tag = 'smem constant byte address 0x4 - core index']
  #allocation1 [shape = 'u32[72,128]{1,0:T(1,128)}', space=vmem, size = 0x9000, scoped, tag = 'internal scratch']
  %s0 = inlined_call_operand.vmem [shape: f32[8,256], index: 0, kind: input, shape index: {}]
  %s1 = inlined_call_operand.hbm [shape: f32[16,24], index: 1, kind: input, shape index: {}]
  %s2 = inlined_call_operand.vmem [shape: f32[8,24], index: 2, kind: input, shape index: {}]
  %s3 = inlined_call_operand.vmem [shape: f32[24,1], index: 3, kind: input, shape index: {}]
  %s4 = inlined_call_operand.vmem [shape: f32[1,128], index: 4, kind: input, shape index: {}]
  %s5 = inlined_call_operand.hbm [shape: f32[8,256], index: 5, kind: output, shape index: {}]
  %s6 = sld [smem:[#allocation0]]
  $region57: #{tpu_custom_call.1} parent=0
    _
  %s8 = ssub.s32 1, %s6
  %s9 = scalar_select 0, %s8, %s6
  $region1: #{tpu_custom_call.1} parent=0
    #allocation2 [shape = 'u8[8192]{0}', space=vmem, size = 0x2000, scoped, tag = 'input window, operand 1, single buffered']
    #allocation3 [shape = 's32[2]{0}', space=sflag, size = 0x8, scoped, tag = 'scoped memory for tpu_custom_call.1']
    #allocation4 [shape = 's32[2]{0}', space=sflag, size = 0x8, scoped, tag = 'scoped memory for tpu_custom_call.1']
    #allocation5 [shape = 'u8[8192]{0}', space=vmem, size = 0x2000, scoped, tag = 'output window, operand 0']
    %10 = vsyncpa [#allocation3], 0
    %11 = vsyncpa [#allocation4], 0
    %s12 = scalar_lea.sflag [#allocation4], 1
    %13 = vsyncpa %s12, 0
    loop: start=0, step=1, limit=4
    $region2: #{tpu_custom_call.1} parent=1 // loop_pre_header
      _
    $region3: #{tpu_custom_call.1} parent=1 // loop_header
      %s15 = sphi 0, %s19
      %p16 = scmp.ge.s32.totalorder %s15, 4
      %s25 = sphi 0, %s27
      %s28 = sphi 0, %s25
      %s29 = sphi 0, %s28
      %s45 = sphi 0, %s29
      %s49 = sphi 0, %s49
      %s51 = sphi 0, %s49
      %s52 = sphi 0, %s51
      %s66 = sphi 0, %s52
      %s70 = sphi 0, %s70
      %s72 = sphi 0, %s70
      %s73 = sphi 0, %s72
      %s87 = sphi 0, %s73
      %s91 = sphi 0, %s91
      %s93 = sphi 0, %s91
      %s94 = sphi 0, %s93
      %s108 = sphi 0, %s94
      %s112 = sphi 0, %s112
      %s114 = sphi 0, %s112
      %s115 = sphi 0, %s114
      %s129 = sphi 0, %s115
      %s135 = sphi 0, %s137
      %s138 = sphi 0, %s135
      %s139 = sphi 0, %s138
      %s155 = sphi 0, %s139
    $region4: #{tpu_custom_call.1} parent=1 // loop_header_branch
      %18 = sbr.rel (%p16) target = $region8
    $region5: #{tpu_custom_call.1} parent=1 // loop_body
      %s20 = ssub.s32 %s15, 1
      %s21 = ssub.s32 %s15, 2
      %s22 = sadd.s32 %s15, 1
      %s23 = ssub.s32 %s15, %s22
      %p24 = scmp.eq.s32.totalorder %s23, 0
      %s26 = sadd.s32 %s25, 1
      %s27 = scalar_select %p24, %s25, %s26
      %p30 = pneg %p24
      %p31 = scmp.eq.s32.totalorder %s15, 1
      %p32 = por %p30, %p31
      %p33 = scmp.ne.s32.totalorder %s25, %s28
      %p34 = scmp.eq.s32.totalorder %s15, 0
      %p35 = por %p33, %p34
      %p36 = scmp.ne.s32.totalorder %s25, %s28
      %p37 = scmp.eq.s32.totalorder %s20, 1
      %p38 = por %p36, %p37
      %p39 = scmp.ne.s32.totalorder %s28, %s29
      %p40 = scmp.eq.s32.totalorder %s20, 0
      %p41 = por %p39, %p40
      %p42 = scmp.ne.s32.totalorder %s28, %s29
      %p43 = scmp.eq.s32.totalorder %s21, 1
      %p44 = por %p42, %p43
      %p46 = scmp.ne.s32.totalorder %s29, %s45
      %p47 = scmp.eq.s32.totalorder %s21, 0
      %p48 = por %p46, %p47
      %s50 = sadd.s32 %s49, 1
      %p53 = scmp.eq.s32.totalorder %s15, 1
      %p54 = scmp.ne.s32.totalorder %s49, %s51
      %p55 = scmp.eq.s32.totalorder %s15, 0
      %p56 = por %p54, %p55
      %p57 = scmp.ne.s32.totalorder %s49, %s51
      %p58 = scmp.eq.s32.totalorder %s20, 1
      %p59 = por %p57, %p58
      %p60 = scmp.ne.s32.totalorder %s51, %s52
      %p61 = scmp.eq.s32.totalorder %s20, 0
      %p62 = por %p60, %p61
      %p63 = scmp.ne.s32.totalorder %s51, %s52
      %p64 = scmp.eq.s32.totalorder %s21, 1
      %p65 = por %p63, %p64
      %p67 = scmp.ne.s32.totalorder %s52, %s66
      %p68 = scmp.eq.s32.totalorder %s21, 0
      %p69 = por %p67, %p68
      %s71 = sadd.s32 %s70, 1
      %p74 = scmp.eq.s32.totalorder %s15, 1
      %p75 = scmp.ne.s32.totalorder %s70, %s72
      %p76 = scmp.eq.s32.totalorder %s15, 0
      %p77 = por %p75, %p76
      %p78 = scmp.ne.s32.totalorder %s70, %s72
      %p79 = scmp.eq.s32.totalorder %s20, 1
      %p80 = por %p78, %p79
      %p81 = scmp.ne.s32.totalorder %s72, %s73
      %p82 = scmp.eq.s32.totalorder %s20, 0
      %p83 = por %p81, %p82
      %p84 = scmp.ne.s32.totalorder %s72, %s73
      %p85 = scmp.eq.s32.totalorder %s21, 1
      %p86 = por %p84, %p85
      %p88 = scmp.ne.s32.totalorder %s73, %s87
      %p89 = scmp.eq.s32.totalorder %s21, 0
      %p90 = por %p88, %p89
      %s92 = sadd.s32 %s91, 1
      %p95 = scmp.eq.s32.totalorder %s15, 1
      %p96 = scmp.ne.s32.totalorder %s91, %s93
      %p97 = scmp.eq.s32.totalorder %s15, 0
      %p98 = por %p96, %p97
      %p99 = scmp.ne.s32.totalorder %s91, %s93
      %p100 = scmp.eq.s32.totalorder %s20, 1
      %p101 = por %p99, %p100
      %p102 = scmp.ne.s32.totalorder %s93, %s94
      %p103 = scmp.eq.s32.totalorder %s20, 0
      %p104 = por %p102, %p103
      %p105 = scmp.ne.s32.totalorder %s93, %s94
      %p106 = scmp.eq.s32.totalorder %s21, 1
      %p107 = por %p105, %p106
      %p109 = scmp.ne.s32.totalorder %s94, %s108
      %p110 = scmp.eq.s32.totalorder %s21, 0
      %p111 = por %p109, %p110
      %s113 = sadd.s32 %s112, 1
      %p116 = scmp.eq.s32.totalorder %s15, 1
      %p117 = scmp.ne.s32.totalorder %s112, %s114
      %p118 = scmp.eq.s32.totalorder %s15, 0
      %p119 = por %p117, %p118
      %p120 = scmp.ne.s32.totalorder %s112, %s114
      %p121 = scmp.eq.s32.totalorder %s20, 1
      %p122 = por %p120, %p121
      %p123 = scmp.ne.s32.totalorder %s114, %s115
      %p124 = scmp.eq.s32.totalorder %s20, 0
      %p125 = por %p123, %p124
      %p126 = scmp.ne.s32.totalorder %s114, %s115
      %p127 = scmp.eq.s32.totalorder %s21, 1
      %p128 = por %p126, %p127
      %p130 = scmp.ne.s32.totalorder %s115, %s129
      %p131 = scmp.eq.s32.totalorder %s21, 0
      %p132 = por %p130, %p131
      %s133 = ssub.s32 %s15, %s22
      %p134 = scmp.eq.s32.totalorder %s133, 0
      %s136 = sadd.s32 %s135, 1
      %s137 = scalar_select %p134, %s135, %s136
      %p140 = pneg %p134
      %p141 = scmp.eq.s32.totalorder %s15, 1
      %p142 = por %p140, %p141
      %p143 = scmp.ne.s32.totalorder %s135, %s138
      %p144 = scmp.eq.s32.totalorder %s15, 0
      %p145 = por %p143, %p144
      %p146 = scmp.ne.s32.totalorder %s135, %s138
      %p147 = scmp.eq.s32.totalorder %s20, 1
      %p148 = por %p146, %p147
      %p149 = scmp.ne.s32.totalorder %s138, %s139
      %p150 = scmp.eq.s32.totalorder %s20, 0
      %p151 = por %p149, %p150
      %p152 = scmp.ne.s32.totalorder %s138, %s139
      %p153 = scmp.eq.s32.totalorder %s21, 1
      %p154 = por %p152, %p153
      %p156 = scmp.ne.s32.totalorder %s139, %s155
      %p157 = scmp.eq.s32.totalorder %s21, 0
      %p158 = por %p156, %p157
      %p159 = scmp.le.s32.totalorder 1, %s15
      %p160 = scmp.lt.s32.totalorder %s15, 3
      %p161 = pnand %p159, %p160
      %p162 = pneg %p161
      // Predicated region
      $region9: #{tpu_custom_call.1} parent=5 // pred_check
        _
      $region10: #{tpu_custom_call.1} parent=5 // pred_check_branch
        %164 = sbr.rel (%p161) target = $region12
      $region11: #{tpu_custom_call.1} parent=5 // pred_region
        %s165 = ssub.s32 %s15, 1
        // Predicated region
        $region13: #{tpu_custom_call.1} parent=11 // pred_check
          %p166 = pneg %p62
        $region14: #{tpu_custom_call.1} parent=11 // pred_check_branch
          %168 = sbr.rel (%p166) target = $region16
        $region15: #{tpu_custom_call.1} parent=11 // pred_region
          %170 = vsyncadd [#allocation3], 0
          %s171 = sshll.u32 %s1, 4
          %s172 = int_to_ptr.hbm [resolvable:$true] %s171
          %s173 = sshll.u32 [#allocation2], 4
          %s174 = int_to_ptr.vmem [resolvable:$true] %s173
          %179 = dma.hbm_to_vmem [thread:$0]  %s172, 256, %s174, [#allocation3], 128, 128, 8
        $region16: #{tpu_custom_call.1} parent=11 // pred_fallthru
          _
        // Predicated region
        $region17: #{tpu_custom_call.1} parent=11 // pred_check
          %p180 = pneg %p83
        $region18: #{tpu_custom_call.1} parent=11 // pred_check_branch
          %182 = sbr.rel (%p180) target = $region20
        $region19: #{tpu_custom_call.1} parent=11 // pred_region
          _
        $region20: #{tpu_custom_call.1} parent=11 // pred_fallthru
          _
        // Predicated region
        $region21: #{tpu_custom_call.1} parent=11 // pred_check
          %p183 = pneg %p104
        $region22: #{tpu_custom_call.1} parent=11 // pred_check_branch
          %185 = sbr.rel (%p183) target = $region24
        $region23: #{tpu_custom_call.1} parent=11 // pred_region
          _
        $region24: #{tpu_custom_call.1} parent=11 // pred_fallthru
          _
        // Predicated region
        $region25: #{tpu_custom_call.1} parent=11 // pred_check
          %p186 = pneg %p125
        $region26: #{tpu_custom_call.1} parent=11 // pred_check_branch
          %188 = sbr.rel (%p186) target = $region28
        $region27: #{tpu_custom_call.1} parent=11 // pred_region
          _
        $region28: #{tpu_custom_call.1} parent=11 // pred_fallthru
          _
      $region12: #{tpu_custom_call.1} parent=5 // pred_fallthru
        _
      %p189 = scmp.lt.s32.totalorder %s15, 2
      // Predicated region
      $region29: #{tpu_custom_call.1} parent=5 // pred_check
        %p190 = pneg %p189
      $region30: #{tpu_custom_call.1} parent=5 // pred_check_branch
        %192 = sbr.rel (%p190) target = $region32
      $region31: #{tpu_custom_call.1} parent=5 // pred_region
        // Predicated region
        $region33: #{tpu_custom_call.1} parent=31 // pred_check
          %p193 = pneg %p35
        $region34: #{tpu_custom_call.1} parent=31 // pred_check_branch
          %195 = sbr.rel (%p193) target = $region36
        $region35: #{tpu_custom_call.1} parent=31 // pred_region
          %p196 = scmp.lt.s32.totalorder %s15, 1
          %s197 = scalar_select %p196, %s15, 1
          %s198 = smul.addr %s197, 8
          %s199 = scalar_lea.vmem %s0, %s198
        $region36: #{tpu_custom_call.1} parent=31 // pred_fallthru
          _
      $region32: #{tpu_custom_call.1} parent=5 // pred_fallthru
        _
      %p200 = scmp.le.s32.totalorder 1, %s15
      %p201 = scmp.lt.s32.totalorder %s15, 3
      %p202 = pnand %p200, %p201
      %p203 = pneg %p202
      // Predicated region
      $region37: #{tpu_custom_call.1} parent=5 // pred_check
        _
      $region38: #{tpu_custom_call.1} parent=5 // pred_check_branch
        %205 = sbr.rel (%p202) target = $region40
      $region39: #{tpu_custom_call.1} parent=5 // pred_region
        %s206 = ssub.s32 %s15, 1
        // Predicated region
        $region41: #{tpu_custom_call.1} parent=39 // pred_check
          %p207 = pneg %p62
        $region42: #{tpu_custom_call.1} parent=39 // pred_check_branch
          %209 = sbr.rel (%p207) target = $region44
        $region43: #{tpu_custom_call.1} parent=39 // pred_region
          %211 = dma.done [#allocation3], 256
        $region44: #{tpu_custom_call.1} parent=39 // pred_fallthru
          _
        %p212 = scmp.lt.s32.totalorder %s20, 1
        %s213 = scalar_select %p212, %s20, 1
        %s214 = smul.addr %s213, 8
        %s215 = scalar_lea.vmem %s0, %s214
        %p216 = pneg %p41
        %p217 = pneg %p38
        %p218 = pneg %p62
        %p219 = pneg %p59
        %p220 = pneg %p83
        %p221 = pneg %p80
        %p222 = pneg %p104
        %p223 = pneg %p101
        %p224 = pneg %p125
        %p225 = pneg %p122
        %p226 = pneg %p151
        %p227 = pneg %p148
        %s228 = sand.u32 %s138, 1
        %s229 = scalar_lea.sflag [#allocation4], %s228
        %s230 = sand.u32 %s138, 1
        %s231 = smul.addr %s230, 8
        %s232 = scalar_lea.vmem [#allocation5], %s231
        %p233 = scmp.lt.s32.totalorder %s20, 1
        %s234 = scalar_select %p233, %s20, 1
        %s235 = smul.addr %s234, 8
        %s236 = scalar_lea.vmem %s0, %s235
        %v237 = vld [vmem:[%s236] sm:$0xff]
        %v238 = vld [vmem:[%s4] sm:$0x1]
        %v239 = vld [vmem:[%s3] sm:$0xff]
        %v240 = vld [vmem:[%s3 + $0x8] sm:$0xff]
        %v241 = vld [vmem:[%s3 + $0x10] sm:$0xff]
        %v242 = vld [vmem:[#allocation2] sm:$0xff]
        %v243 = vld [vmem:[#allocation2 + $0x8] sm:$0xff]
        %244 = vrot.lane.b32.xlu0 %v237, 4
        %v245 = vpop.permute.xlu0 %244
        %246 = vrot.lane.b32.xlu0 %v237, 2
        %v247 = vpop.permute.xlu0 %246
        %vm248 = vcmask 195584
        %v250 = vsel %vm248, %v242, 0
        %v253 = vsel %vm248, %v243, 0
        %255 = vmatpush.msra.mxu0 0.0
        %256 = vmatpush.msra.mxu0 0.0
        %257 = vmatpush.msra.mxu0 0.0
        %258 = vmatpush.msra.mxu0 0.0
        %259 = vmatpush.msra.mxu0 0.0
        %260 = vmatpush.msra.mxu0 0.0
        %261 = vmatpush.msra.mxu0 0.0
        %262 = vmatpush.msra.mxu0 0.0
        %263 = vmatpush.msra.mxu0 0.0
        %264 = vmatpush.msra.mxu0 0.0
        %265 = vmatpush.msra.mxu0 0.0
        %266 = vmatpush.msra.mxu0 0.0
        %267 = vmatpush.msra.mxu0 0.0
        %268 = vmatpush.msra.mxu0 %v237
        %269 = vmatpush.msra.mxu0 %v247
        %270 = vmatpush.msra.mxu0 %v245
        %271 = vmatmul.f32.gmra.mxu0 %v250
        %v272 = vpop.f32.mrf.mxu0
        %v273 = vadd.f32 0.0, %v272
        %274 = vmatmul.f32.gmra.mxu0 %v253
        %v275 = vpop.f32.mrf.mxu0
        %v276 = vadd.f32 0.0, %v275
        %277 = vdwg.mxu0
        %279 = vset.pattern.permute.xlu0 0
        %280 = vperm.xlu0 %279, %v239
        %v281 = vpop.permute.xlu0 %280
        %v283 = vadd.f32 %v273, %v281
        %v284 = vmax.f32 %v283, 0.0
        %v286 = vperm.slane %v238, 0
        %v288 = vmul.f32 %v286, %v284
        %290 = vset.pattern.permute.xlu0 0
        %291 = vperm.xlu0 %290, %v240
        %v292 = vpop.permute.xlu0 %291
        %v294 = vadd.f32 %v276, %v292
        %v295 = vld [vmem:[%s2] sm:$0xff]
        %296 = vrot.lane.b32.xlu0 %v288, 4
        %v297 = vpop.permute.xlu0 %296
        %298 = vrot.lane.b32.xlu0 %v288, 2
        %v299 = vpop.permute.xlu0 %298
        %301 = vset.pattern.permute.xlu0 0
        %302 = vperm.xlu0 %301, %v241
        %v303 = vpop.permute.xlu0 %302
        %v306 = vsel %vm248, %v295, 0
        %308 = vmatpush.msra.mxu0 0.0
        %309 = vmatpush.msra.mxu0 0.0
        %310 = vmatpush.msra.mxu0 0.0
        %311 = vmatpush.msra.mxu0 0.0
        %312 = vmatpush.msra.mxu0 0.0
        %313 = vmatpush.msra.mxu0 0.0
        %314 = vmatpush.msra.mxu0 0.0
        %315 = vmatpush.msra.mxu0 0.0
        %316 = vmatpush.msra.mxu0 0.0
        %317 = vmatpush.msra.mxu0 0.0
        %318 = vmatpush.msra.mxu0 0.0
        %319 = vmatpush.msra.mxu0 0.0
        %320 = vmatpush.msra.mxu0 0.0
        %321 = vmatpush.msra.mxu0 %v288
        %322 = vmatpush.msra.mxu0 %v299
        %323 = vmatpush.msra.mxu0 %v297
        %324 = vmatmul.f32.gmra.mxu0 %v306
        %v325 = vpop.f32.mrf.mxu0
        %v326 = vadd.f32 %v303, %v325
        %327 = vdwg.mxu0
        %v328 = vmax.f32 %v326, 0.0
        %v329 = vadd.f32 %v328, %v294
        %v330 = vmax.f32 %v329, 0.0
        %331 = vst [vmem:[%s232] sm:$0xff] %v330
        %s332 = sand.u32 %s138, 1
        %s333 = scalar_lea.sflag [#allocation4], %s332
        %s334 = sand.u32 %s138, 1
        %s335 = smul.addr %s334, 8
        %s336 = scalar_lea.vmem [#allocation5], %s335
        // Predicated region
        $region45: #{tpu_custom_call.1} parent=39 // pred_check
          %p337 = pneg %p148
        $region46: #{tpu_custom_call.1} parent=39 // pred_check_branch
          %339 = sbr.rel (%p337) target = $region48
        $region47: #{tpu_custom_call.1} parent=39 // pred_region
          %341 = vsyncadd %s333, 0
          %s342 = smul.addr %s20, 8
          %s343 = scalar_lea.hbm %s5, %s342
          %s345 = sshll.u32 %s336, 4
          %s346 = int_to_ptr.vmem [resolvable:$true] %s345
          %s347 = sshll.u32 %s343, 4
          %s348 = int_to_ptr.hbm [resolvable:$true] %s347
          %350 = dma.vmem_to_hbm [thread:$0]  %s346, 128, %s348, %s333
        $region48: #{tpu_custom_call.1} parent=39 // pred_fallthru
          _
      $region40: #{tpu_custom_call.1} parent=5 // pred_fallthru
        _
      %p351 = scmp.le.s32.totalorder 2, %s15
      // Predicated region
      $region49: #{tpu_custom_call.1} parent=5 // pred_check
        %p352 = pneg %p351
      $region50: #{tpu_custom_call.1} parent=5 // pred_check_branch
        %354 = sbr.rel (%p352) target = $region52
      $region51: #{tpu_custom_call.1} parent=5 // pred_region
        %s355 = ssub.s32 %s15, 2
        // Predicated region
        $region53: #{tpu_custom_call.1} parent=51 // pred_check
          %p356 = pneg %p154
        $region54: #{tpu_custom_call.1} parent=51 // pred_check_branch
          %358 = sbr.rel (%p356) target = $region56
        $region55: #{tpu_custom_call.1} parent=51 // pred_region
          %s359 = sand.u32 %s139, 1
          %s360 = scalar_lea.sflag [#allocation4], %s359
          %s361 = sand.u32 %s139, 1
          %s362 = smul.addr %s361, 8
          %s363 = scalar_lea.vmem [#allocation5], %s362
          %365 = dma.done %s360, 128
        $region56: #{tpu_custom_call.1} parent=51 // pred_fallthru
          _
      $region52: #{tpu_custom_call.1} parent=5 // pred_fallthru
        _
    $region6: #{tpu_custom_call.1} parent=1 // loop_footer
      %s19 = sadd.s32 1, %s15
    $region7: #{tpu_custom_call.1} parent=1 // loop_footer_branch
      %14 = sbr.rel target = $region3
    $region8: #{tpu_custom_call.1} parent=1 // loop_exit
      _
    %366 = vsyncpa [#allocation3], 1
    %s367 = scalar_lea.sflag [#allocation3], 1
    %368 = vsyncpa %s367, 1
    %369 = vsyncpa [#allocation4], 1
    %s370 = scalar_lea.sflag [#allocation4], 1
    %371 = vsyncpa %s370, 1

</llo_original>
